<compile_context>
chip_gen: v6e
topology: v6e:2x2x1
jax: 0.10.0
libtpu: 0.0.40
codegen_flags: <defaults>
</compile_context>

<pallas_src>
import jax
import jax.numpy as jnp
import numpy as np
from jax.experimental import pallas as pl
from jax.experimental.pallas import tpu as pltpu


# -----------------------------------------------------------------------------
# Kernel: one pixel tile of
#   out[B, TN] = (texcode[B, K] @ basis_q[K, TN]) * scale[1, TN] + mean[1, TN]
# -----------------------------------------------------------------------------
def flametex_kernel(texcode_ref, basis_ref, scale_ref, mean_ref, out_ref):
    if basis_ref.dtype == jnp.float32:
        # Exact f32 path (validation / high-precision mode).
        a = texcode_ref[...]
        b = basis_ref[...]
    else:
        # int8 / fp8 / bf16 basis: values are exact in bf16; accumulate in f32 on MXU.
        # TODO(synk): on v7x feed float8_e4m3fn natively to the MXU instead of bf16 cast.
        a = texcode_ref[...].astype(jnp.bfloat16)
        b = basis_ref[...].astype(jnp.bfloat16)
    acc = jnp.dot(a, b, preferred_element_type=jnp.float32)          # [B, TN] (MXU)
    out_ref[...] = acc * scale_ref[...] + mean_ref[...]              # dequant + mean (VPU)


# -----------------------------------------------------------------------------
# One-time parameter preparation (cache results; analogous to registered buffers).
#   Output element (b, c', i, j) of the PyTorch module equals
#     mean[col] + sum_k basis[col, k] * texcode[b, k],  col = (2i*W + 2j)*3 + (2 - c')
#   so we gather exactly those columns in (c', i, j) C-order, then quantize.
# -----------------------------------------------------------------------------
def prepare_flametex_params(texture_mean, texture_basis, H, W,
                            basis_dtype=jnp.int8, lane_block=128):
    """
    texture_mean:  [1, 1, N] float32   (N = H * W * 3)
    texture_basis: [1, N, K] float32
    basis_dtype:   jnp.int8 (v5e/v6e), jnp.float8_e4m3fn (v7x), jnp.bfloat16, jnp.float32
    returns: basis_q [K, Nk], scale [1, Nk] f32, mean [1, Nk] f32, (H//2, W//2)
             with Nk = 3 * (H//2) * (W//2)
    """
    assert H % 2 == 0 and W % 2 == 0, "half-size nearest interpolate needs even H, W"
    mean_np = np.asarray(texture_mean, dtype=np.float32).reshape(-1)        # [N]
    basis_np = np.asarray(texture_basis, dtype=np.float32)[0]               # [N, K]
    N, K = basis_np.shape
    assert N == H * W * 3 and mean_np.shape[0] == N
    Hd, Wd = H // 2, W // 2

    c = np.arange(3)
    i = np.arange(Hd)
    j = np.arange(Wd)
    # flat NHWC column feeding output element (c', i, j):  (2i*W + 2j)*3 + (2 - c')
    cols = ((2 * i[:, None] * W + 2 * j[None, :]) * 3)[None, :, :] \
        + (2 - c)[:, None, None]
    cols = cols.reshape(-1).astype(np.int64)                                # [Nk]

    basis_kept = np.ascontiguousarray(basis_np[cols, :].T)                  # [K, Nk] f32
    mean_kept = mean_np[cols].reshape(1, -1).astype(np.float32)             # [1, Nk]
    Nk = basis_kept.shape[1]

    bd = np.dtype(basis_dtype)
    if bd in (np.dtype(np.float32), np.dtype(jnp.bfloat16)):
        basis_q = jnp.asarray(basis_kept, dtype=basis_dtype)
        scale_cols = np.ones((1, Nk), np.float32)
    else:
        # int8 / fp8 quantization with one scale per 128-lane column block (shared over K).
        qmax = 127.0 if bd == np.dtype(np.int8) else 448.0    # e4m3 max finite
        nb = -(-Nk // lane_block)
        pad = nb * lane_block - Nk
        amax = np.pad(np.abs(basis_kept), ((0, 0), (0, pad))) \
            .reshape(K, nb, lane_block).max(axis=(0, 2))
        scale_blk = (np.maximum(amax, 1e-12) / qmax).astype(np.float32)
        scale_1d = np.repeat(scale_blk, lane_block)[:Nk]
        scaled = basis_kept / scale_1d[None, :]
        if bd == np.dtype(np.int8):
            basis_q = jnp.asarray(np.clip(np.rint(scaled), -127, 127).astype(np.int8))
        else:
            basis_q = jnp.asarray(scaled, dtype=basis_dtype)
        scale_cols = scale_1d.reshape(1, Nk)

    return (basis_q,
            jnp.asarray(scale_cols, dtype=jnp.float32),
            jnp.asarray(mean_kept, dtype=jnp.float32),
            (Hd, Wd))


def _pixel_axis_semantics():
    # v7x: use CORE_PARALLEL so both TensorCores stream HBM (this kernel is pure
    # bandwidth); single-TC v5e/v6e: plain PARALLEL.
    try:
        kind = jax.devices()[0].device_kind.lower()
    except Exception:
        kind = ""
    if "7" in kind:
        return (pltpu.CORE_PARALLEL,)
    return (pltpu.PARALLEL,)


def flametex_forward(texcode, basis_q, scale, mean, out_hw, tn=24576):
    """
    texcode: [B, K] float32
    basis_q: [K, Nk] (int8 / fp8 / bf16 / f32), Nk = 3 * (H//2) * (W//2)
    scale:   [1, Nk] float32 (dequant scales; ones for f32/bf16 basis)
    mean:    [1, Nk] float32
    returns: [B, 3, H//2, W//2] float32  (NCHW, BGR) -- matches the PyTorch module.
    """
    B, K = texcode.shape
    Kb, Nk = basis_q.shape
    assert Kb == K and scale.shape == (1, Nk) and mean.shape == (1, Nk)
    Hd, Wd = out_hw
    assert Nk == 3 * Hd * Wd

    tn = min(tn, Nk)                       # tiny inputs: one full-width block
    assert tn == Nk or tn % 128 == 0, "pixel tile must be lane-aligned"
    grid = (pl.cdiv(Nk, tn),)

    itemsize = basis_q.dtype.itemsize
    cost = pl.CostEstimate(
        flops=2 * B * K * Nk + 2 * B * Nk,
        transcendentals=0,
        bytes_accessed=K * Nk * itemsize + 2 * Nk * 4 + B * Nk * 4 + B * K * 4,
    )

    # Explicit, generation-aware VMEM budget: double-buffered tiles + headroom,
    # floored at 32 MiB (explicit raise over v5e's 16 MiB scoped default) and capped
    # at 48 MiB (safe inside v7x's 64 MiB physical VMEM per TC).
    per_step = K * tn * itemsize + (B + 2) * tn * 4
    vmem_needed = 2 * per_step + 2 * B * K * 4
    vmem_limit = int(min(48 << 20, max(32 << 20, 2 * vmem_needed)))

    flat = pl.pallas_call(
        flametex_kernel,
        out_shape=jax.ShapeDtypeStruct((B, Nk), jnp.float32),
        grid=grid,
        in_specs=[
            pl.BlockSpec((B, K), lambda i: (0, 0)),    # texcode: tiny, resident
            pl.BlockSpec((K, tn), lambda i: (0, i)),   # basis tile (dominant HBM stream)
            pl.BlockSpec((1, tn), lambda i: (0, i)),   # per-lane-block dequant scales
            pl.BlockSpec((1, tn), lambda i: (0, i)),   # mean tile
        ],
        out_specs=pl.BlockSpec((B, tn), lambda i: (0, i)),
        compiler_params=pltpu.CompilerParams(
            dimension_semantics=_pixel_axis_semantics(),
            vmem_limit_bytes=vmem_limit,
        ),
        cost_estimate=cost,
    )(texcode, basis_q, scale, mean)

    # Free metadata reshape: flat is already (c', i, j)-ordered per batch element.
    return flat.reshape(B, 3, Hd, Wd)


def flametex_reference(texcode, texture_mean, texture_basis, H, W):
    """Pure-JAX replica of the PyTorch forward for validation."""
    B = texcode.shape[0]
    t = texture_mean + (texture_basis * texcode[:, None, :]).sum(-1)
    t = t.reshape(B, H, W, 3)
    t = jnp.transpose(t, (0, 3, 1, 2))
    t = t[:, :, ::2, ::2]       # F.interpolate(..., [H//2, W//2]) nearest
    t = t[:, ::-1, :, :]        # channel order [2, 1, 0]
    return t


if __name__ == "__main__":
    # Small shapes consistent with the module (real model: H=W=512, n_tex up to 200).
    B = 2
    n_tex = 8
    H = W = 32
    N = H * W * 3  # 3072

    key = jax.random.PRNGKey(0)
    k_mean, k_basis, k_code = jax.random.split(key, 3)

    # Deterministic synthetic "buffers" matching the module's registered shapes:
    #   texture_mean  : [1, 1, N],  texture_basis : [1, N, n_tex]
    texture_mean = jax.random.uniform(k_mean, (1, 1, N), dtype=jnp.float32)
    texture_basis = 0.1 * jax.random.normal(k_basis, (1, N, n_tex), dtype=jnp.float32)
    texcode = jax.random.normal(k_code, (B, n_tex), dtype=jnp.float32)

    ref = jax.block_until_ready(
        flametex_reference(texcode, texture_mean, texture_basis, H, W))

    # 1) f32-parameter path: tight check of the kernel math + folded downsample/BGR layout.
    b32, s32, m32, out_hw = prepare_flametex_params(
        texture_mean, texture_basis, H, W, basis_dtype=jnp.float32)
    out32 = jax.block_until_ready(flametex_forward(texcode, b32, s32, m32, out_hw))
    assert out32.shape == (B, 3, H // 2, W // 2), out32.shape
    assert out32.dtype == jnp.float32
    np.testing.assert_allclose(np.asarray(out32), np.asarray(ref), rtol=1e-5, atol=1e-5)

    # 2) Production path (v5e/v6e): int8 basis + per-lane-block scales, multi-tile grid.
    #    (On v7x pass basis_dtype=jnp.float8_e4m3fn -- its MXU has no integer path.)
    b8, s8, m8, out_hw = prepare_flametex_params(
        texture_mean, texture_basis, H, W, basis_dtype=jnp.int8)
    out8 = jax.block_until_ready(
        flametex_forward(texcode, b8, s8, m8, out_hw, tn=384))   # 2 lane-aligned tiles
    assert out8.shape == (B, 3, H // 2, W // 2), out8.shape
    assert out8.dtype == jnp.float32
    np.testing.assert_allclose(np.asarray(out8), np.asarray(ref), rtol=3e-2, atol=3e-2)

    print("KERNEL_OK")
</pallas_src>

<mosaic_0001>
module attributes {stable_mosaic.version = 11 : i64} {
  func.func @flametex_kernel(%arg0: i32, %arg1: memref<2x8xf32, #tpu.memory_space<vmem>>, %arg2: memref<8x768xf32, #tpu.memory_space<vmem>>, %arg3: memref<1x768xf32, #tpu.memory_space<vmem>>, %arg4: memref<1x768xf32, #tpu.memory_space<vmem>>, %arg5: memref<2x768xf32, #tpu.memory_space<vmem>>) attributes {dimension_semantics = [#tpu.dimension_semantics<parallel>], iteration_bounds = array<i64: 1>, scalar_prefetch = 0 : i64, scratch_operands = 0 : i64, tpu.core_type = #tpu.core_type<tc>, window_params = [{pipeline_mode = #tpu.pipeline_mode<synchronous>, transform_indices = @transform_0, window_bounds = array<i64: 2, 8>}, {transform_indices = @transform_1, window_bounds = array<i64: 8, 768>}, {transform_indices = @transform_2, window_bounds = array<i64: 1, 768>}, {transform_indices = @transform_3, window_bounds = array<i64: 1, 768>}, {transform_indices = @transform_4, window_bounds = array<i64: 2, 768>}]} {
    %c0 = arith.constant 0 : index
    %c0_0 = arith.constant 0 : index
    %0 = vector.load %arg1[%c0, %c0_0] : memref<2x8xf32, #tpu.memory_space<vmem>>, vector<2x8xf32>
    %c0_1 = arith.constant 0 : index
    %c0_2 = arith.constant 0 : index
    %1 = vector.load %arg2[%c0_1, %c0_2] : memref<8x768xf32, #tpu.memory_space<vmem>>, vector<8x768xf32>
    %cst = arith.constant dense<0.000000e+00> : vector<2x768xf32>
    %2 = tpu.matmul %0, %1, %cst {dimension_numbers = #tpu.dot_dimension_numbers<[1], [0], [0], [1], [0, 0, 1, 1], [], []>} : vector<2x8xf32>, vector<8x768xf32>, vector<2x768xf32> -> vector<2x768xf32>
    %c0_3 = arith.constant 0 : index
    %c0_4 = arith.constant 0 : index
    %3 = vector.load %arg3[%c0_3, %c0_4] : memref<1x768xf32, #tpu.memory_space<vmem>>, vector<1x768xf32>
    %4 = vector.broadcast %3 : vector<1x768xf32> to vector<2x768xf32>
    %5 = arith.mulf %2, %4 : vector<2x768xf32>
    %c0_5 = arith.constant 0 : index
    %c0_6 = arith.constant 0 : index
    %6 = vector.load %arg4[%c0_5, %c0_6] : memref<1x768xf32, #tpu.memory_space<vmem>>, vector<1x768xf32>
    %7 = vector.broadcast %6 : vector<1x768xf32> to vector<2x768xf32>
    %8 = arith.addf %5, %7 : vector<2x768xf32>
    %c0_7 = arith.constant 0 : index
    %c0_8 = arith.constant 0 : index
    %9 = vector.load %arg5[%c0_7, %c0_8] : memref<2x768xf32, #tpu.memory_space<vmem>>, vector<2x768xf32>
    tpu.vector_store %arg5[%c0_7, %c0_8], %8 {strides = array<i32>} : memref<2x768xf32, #tpu.memory_space<vmem>>, vector<2x768xf32>,
    return
  }
  func.func @transform_0(%arg0: i32) -> (i32, i32) {
    %c0_i32 = arith.constant 0 : i32
    %c0_i32_0 = arith.constant 0 : i32
    %c0_i32_1 = arith.constant 0 : i32
    return %c0_i32, %c0_i32_0 : i32, i32
  }
  func.func @transform_1(%arg0: i32) -> (i32, i32) {
    %c0_i32 = arith.constant 0 : i32
    %c0_i32_0 = arith.constant 0 : i32
    return %c0_i32, %arg0 : i32, i32
  }
  func.func @transform_2(%arg0: i32) -> (i32, i32) {
    %c0_i32 = arith.constant 0 : i32
    %c0_i32_0 = arith.constant 0 : i32
    return %c0_i32, %arg0 : i32, i32
  }
  func.func @transform_3(%arg0: i32) -> (i32, i32) {
    %c0_i32 = arith.constant 0 : i32
    %c0_i32_0 = arith.constant 0 : i32
    return %c0_i32, %arg0 : i32, i32
  }
  func.func @transform_4(%arg0: i32) -> (i32, i32) {
    %c0_i32 = arith.constant 0 : i32
    %c0_i32_0 = arith.constant 0 : i32
    return %c0_i32, %arg0 : i32, i32
  }
}

</mosaic_0001>

<llo_original>
// kernel: tpu_custom_call.1
$region0: #{tpu_custom_call.1}
  #allocation0 [shape = 'u32[]', space=smem, size = 0x4, offset = 0x4, fixed_abs, tag = 'smem constant byte address 0x4 - core index']
  #allocation1 [shape = 'u32[144,128]{1,0:T(1,128)}', space=vmem, size = 0x12000, scoped, tag = 'internal scratch']
  %s0 = inlined_call_operand.hbm [shape: f32[2,8], index: 0, kind: input, shape index: {}]
  %s1 = inlined_call_operand.hbm [shape: f32[8,768], index: 1, kind: input, shape index: {}]
  %s2 = inlined_call_operand.hbm [shape: f32[1,768], index: 2, kind: input, shape index: {}]
  %s3 = inlined_call_operand.hbm [shape: f32[1,768], index: 3, kind: input, shape index: {}]
  %s4 = inlined_call_operand.hbm [shape: f32[2,768], index: 4, kind: output, shape index: {}]
  %s5 = sld [smem:[#allocation0]]
  $region42: #{tpu_custom_call.1} parent=0
    _
  %s7 = ssub.s32 1, %s5
  %s8 = scalar_select 0, %s7, %s5
  $region1: #{tpu_custom_call.1} parent=0
    #allocation2 [shape = 'u8[1024]{0}', space=vmem, size = 0x400, scoped, tag = 'input window, operand 0, single buffered']
    #allocation3 [shape = 's32[1]{0}', space=sflag, size = 0x4, scoped, tag = 'scoped memory for tpu_custom_call.1']
    #allocation4 [shape = 's32[1]{0}', space=sflag, size = 0x4, scoped, tag = 'scoped memory for tpu_custom_call.1']
    #allocation5 [shape = 'u8[24576]{0}', space=vmem, size = 0x6000, scoped, tag = 'input window, operand 1, single buffered']
    #allocation6 [shape = 's32[1]{0}', space=sflag, size = 0x4, scoped, tag = 'scoped memory for tpu_custom_call.1']
    #allocation7 [shape = 'u8[3072]{0}', space=vmem, size = 0xc00, scoped, tag = 'input window, operand 2, single buffered']
    #allocation8 [shape = 'u8[3072]{0}', space=vmem, size = 0xc00, scoped, tag = 'input window, operand 3, single buffered']
    #allocation9 [shape = 's32[1]{0}', space=sflag, size = 0x4, scoped, tag = 'scoped memory for tpu_custom_call.1']
    #allocation10 [shape = 'u8[6144]{0}', space=vmem, size = 0x1800, scoped, tag = 'output window, operand 0, single buffered']
    %9 = vsyncpa [#allocation3], 0
    %10 = vsyncpa [#allocation6], 0
    %11 = vsyncpa [#allocation9], 0
    %12 = vsyncpa [#allocation4], 0
    // Predicated region
    $region2: #{tpu_custom_call.1} parent=1 // pred_check
      _
    $region3: #{tpu_custom_call.1} parent=1 // pred_check_branch
      %14 = sbr.rel (0) target = $region5
    $region4: #{tpu_custom_call.1} parent=1 // pred_region
      %s16 = ssub.s32 32, 32
      %17 = vsyncadd [#allocation3], %s16
      %s19 = sshll.u32 [#allocation2], 4
      %s20 = int_to_ptr.vmem [resolvable:$true] %s19
      %22 = dma.hbm_to_vmem [thread:$0]  %s0, 32, %s20, [#allocation3]
    $region5: #{tpu_custom_call.1} parent=1 // pred_fallthru
      _
    // Predicated region
    $region6: #{tpu_custom_call.1} parent=1 // pred_check
      _
    $region7: #{tpu_custom_call.1} parent=1 // pred_check_branch
      %24 = sbr.rel (0) target = $region9
    $region8: #{tpu_custom_call.1} parent=1 // pred_region
      %s26 = ssub.s32 768, 768
      %27 = vsyncadd [#allocation6], %s26
      %s29 = sshll.u32 [#allocation5], 4
      %s30 = int_to_ptr.vmem [resolvable:$true] %s29
      %32 = dma.hbm_to_vmem [thread:$0]  %s1, 768, %s30, [#allocation6]
    $region9: #{tpu_custom_call.1} parent=1 // pred_fallthru
      _
    // Predicated region
    $region10: #{tpu_custom_call.1} parent=1 // pred_check
      _
    $region11: #{tpu_custom_call.1} parent=1 // pred_check_branch
      %34 = sbr.rel (0) target = $region13
    $region12: #{tpu_custom_call.1} parent=1 // pred_region
      %s36 = ssub.s32 96, 96
      %37 = vsyncadd [#allocation6], %s36
      %s39 = sshll.u32 [#allocation7], 4
      %s40 = int_to_ptr.vmem [resolvable:$true] %s39
      %42 = dma.hbm_to_vmem [thread:$0]  %s2, 96, %s40, [#allocation6]
    $region13: #{tpu_custom_call.1} parent=1 // pred_fallthru
      _
    // Predicated region
    $region14: #{tpu_custom_call.1} parent=1 // pred_check
      _
    $region15: #{tpu_custom_call.1} parent=1 // pred_check_branch
      %44 = sbr.rel (0) target = $region17
    $region16: #{tpu_custom_call.1} parent=1 // pred_region
      %s46 = ssub.s32 96, 96
      %47 = vsyncadd [#allocation9], %s46
      %s49 = sshll.u32 [#allocation8], 4
      %s50 = int_to_ptr.vmem [resolvable:$true] %s49
      %52 = dma.hbm_to_vmem [thread:$0]  %s3, 96, %s50, [#allocation9]
    $region17: #{tpu_custom_call.1} parent=1 // pred_fallthru
      _
    // Predicated region
    $region18: #{tpu_custom_call.1} parent=1 // pred_check
      _
    $region19: #{tpu_custom_call.1} parent=1 // pred_check_branch
      %54 = sbr.rel (0) target = $region21
    $region20: #{tpu_custom_call.1} parent=1 // pred_region
      %55 = dma.done [#allocation3], 32
    $region21: #{tpu_custom_call.1} parent=1 // pred_fallthru
      _
    // Predicated region
    $region22: #{tpu_custom_call.1} parent=1 // pred_check
      _
    $region23: #{tpu_custom_call.1} parent=1 // pred_check_branch
      %57 = sbr.rel (0) target = $region25
    $region24: #{tpu_custom_call.1} parent=1 // pred_region
      %58 = dma.done [#allocation6], 768
    $region25: #{tpu_custom_call.1} parent=1 // pred_fallthru
      _
    // Predicated region
    $region26: #{tpu_custom_call.1} parent=1 // pred_check
      _
    $region27: #{tpu_custom_call.1} parent=1 // pred_check_branch
      %60 = sbr.rel (0) target = $region29
    $region28: #{tpu_custom_call.1} parent=1 // pred_region
      %61 = dma.done [#allocation6], 96
    $region29: #{tpu_custom_call.1} parent=1 // pred_fallthru
      _
    // Predicated region
    $region30: #{tpu_custom_call.1} parent=1 // pred_check
      _
    $region31: #{tpu_custom_call.1} parent=1 // pred_check_branch
      %63 = sbr.rel (0) target = $region33
    $region32: #{tpu_custom_call.1} parent=1 // pred_region
      %64 = dma.done [#allocation9], 96
    $region33: #{tpu_custom_call.1} parent=1 // pred_fallthru
      _
    %v65 = vld [vmem:[#allocation2] sm:$0x3]
    %v66 = vld [vmem:[#allocation5] sm:$0xff]
    %v67 = vld [vmem:[#allocation5 + $0x8] sm:$0xff]
    %v68 = vld [vmem:[#allocation5 + $0x10] sm:$0xff]
    %v69 = vld [vmem:[#allocation5 + $0x18] sm:$0xff]
    %v70 = vld [vmem:[#allocation5 + $0x20] sm:$0xff]
    %v71 = vld [vmem:[#allocation5 + $0x28] sm:$0xff]
    %vm72 = vcmask 64512
    %v74 = vsel %vm72, %v65, 0
    %76 = vmatprep.subr.mxu0 0.0
    %77 = vmatpush1.msra.mxu0 0.0
    %78 = vmatprep.subr.mxu0 0.0
    %79 = vmatpush1.msra.mxu0 0.0
    %80 = vmatprep.subr.mxu0 0.0
    %81 = vmatpush1.msra.mxu0 0.0
    %82 = vmatprep.subr.mxu0 0.0
    %83 = vmatpush1.msra.mxu0 0.0
    %84 = vmatprep.subr.mxu0 0.0
    %85 = vmatpush1.msra.mxu0 0.0
    %86 = vmatprep.subr.mxu0 0.0
    %87 = vmatpush1.msra.mxu0 0.0
    %88 = vmatprep.subr.mxu0 0.0
    %89 = vmatpush1.msra.mxu0 0.0
    %90 = vmatprep.subr.mxu0 0.0
    %91 = vmatpush1.msra.mxu0 0.0
    %92 = vmatprep.subr.mxu0 0.0
    %93 = vmatpush1.msra.mxu0 0.0
    %94 = vmatprep.subr.mxu0 0.0
    %95 = vmatpush1.msra.mxu0 0.0
    %96 = vmatprep.subr.mxu0 0.0
    %97 = vmatpush1.msra.mxu0 0.0
    %98 = vmatprep.subr.mxu0 0.0
    %99 = vmatpush1.msra.mxu0 0.0
    %100 = vmatprep.subr.mxu0 0.0
    %101 = vmatpush1.msra.mxu0 0.0
    %102 = vmatprep.subr.mxu0 0.0
    %103 = vmatpush1.msra.mxu0 0.0
    %104 = vmatprep.subr.mxu0 0.0
    %105 = vmatpush1.msra.mxu0 0.0
    %106 = vmatprep.subr.mxu0 %v67
    %107 = vmatpush1.msra.mxu0 %v66
    %108 = vmatprep.subr.mxu0 0.0
    %109 = vmatpush2.msra.mxu0 0.0
    %110 = vmatprep.subr.mxu0 0.0
    %111 = vmatpush2.msra.mxu0 0.0
    %112 = vmatprep.subr.mxu0 0.0
    %113 = vmatpush2.msra.mxu0 0.0
    %114 = vmatprep.subr.mxu0 0.0
    %115 = vmatpush2.msra.mxu0 0.0
    %116 = vmatprep.subr.mxu0 0.0
    %117 = vmatpush2.msra.mxu0 0.0
    %118 = vmatprep.subr.mxu0 0.0
    %119 = vmatpush2.msra.mxu0 0.0
    %120 = vmatprep.subr.mxu0 0.0
    %121 = vmatpush2.msra.mxu0 0.0
    %122 = vmatprep.subr.mxu0 0.0
    %123 = vmatpush2.msra.mxu0 0.0
    %124 = vmatprep.subr.mxu0 0.0
    %125 = vmatpush2.msra.mxu0 0.0
    %126 = vmatprep.subr.mxu0 0.0
    %127 = vmatpush2.msra.mxu0 0.0
    %128 = vmatprep.subr.mxu0 0.0
    %129 = vmatpush2.msra.mxu0 0.0
    %130 = vmatprep.subr.mxu0 0.0
    %131 = vmatpush2.msra.mxu0 0.0
    %132 = vmatprep.subr.mxu0 0.0
    %133 = vmatpush2.msra.mxu0 0.0
    %134 = vmatprep.subr.mxu0 0.0
    %135 = vmatpush2.msra.mxu0 0.0
    %136 = vmatprep.subr.mxu0 0.0
    %137 = vmatpush2.msra.mxu0 0.0
    %138 = vmatprep.subr.mxu0 0.0
    %139 = vmatpush2.msra.mxu0 0.0
    %140 = vmatprep.mubr.f32.mxu0 0.0
    %141 = vmatmul.mubr.f32.gmra.mxu0 %v74
    %v142 = vpop.f32.mrf.mxu0
    %v143 = vadd.f32 0.0, %v142
    %v144 = vpop.f32.mrf.mxu0
    %v145 = vadd.f32 0.0, %v144
    %146 = vdwg.mxu0
    %147 = vmatprep.subr.mxu0 0.0
    %148 = vmatpush1.msra.mxu0 0.0
    %149 = vmatprep.subr.mxu0 0.0
    %150 = vmatpush1.msra.mxu0 0.0
    %151 = vmatprep.subr.mxu0 0.0
    %152 = vmatpush1.msra.mxu0 0.0
    %153 = vmatprep.subr.mxu0 0.0
    %154 = vmatpush1.msra.mxu0 0.0
    %155 = vmatprep.subr.mxu0 0.0
    %156 = vmatpush1.msra.mxu0 0.0
    %157 = vmatprep.subr.mxu0 0.0
    %158 = vmatpush1.msra.mxu0 0.0
    %159 = vmatprep.subr.mxu0 0.0
    %160 = vmatpush1.msra.mxu0 0.0
    %161 = vmatprep.subr.mxu0 0.0
    %162 = vmatpush1.msra.mxu0 0.0
    %163 = vmatprep.subr.mxu0 0.0
    %164 = vmatpush1.msra.mxu0 0.0
    %165 = vmatprep.subr.mxu0 0.0
    %166 = vmatpush1.msra.mxu0 0.0
    %167 = vmatprep.subr.mxu0 0.0
    %168 = vmatpush1.msra.mxu0 0.0
    %169 = vmatprep.subr.mxu0 0.0
    %170 = vmatpush1.msra.mxu0 0.0
    %171 = vmatprep.subr.mxu0 0.0
    %172 = vmatpush1.msra.mxu0 0.0
    %173 = vmatprep.subr.mxu0 0.0
    %174 = vmatpush1.msra.mxu0 0.0
    %175 = vmatprep.subr.mxu0 0.0
    %176 = vmatpush1.msra.mxu0 0.0
    %177 = vmatprep.subr.mxu0 %v69
    %178 = vmatpush1.msra.mxu0 %v68
    %179 = vmatprep.subr.mxu0 0.0
    %180 = vmatpush2.msra.mxu0 0.0
    %181 = vmatprep.subr.mxu0 0.0
    %182 = vmatpush2.msra.mxu0 0.0
    %183 = vmatprep.subr.mxu0 0.0
    %184 = vmatpush2.msra.mxu0 0.0
    %185 = vmatprep.subr.mxu0 0.0
    %186 = vmatpush2.msra.mxu0 0.0
    %187 = vmatprep.subr.mxu0 0.0
    %188 = vmatpush2.msra.mxu0 0.0
    %189 = vmatprep.subr.mxu0 0.0
    %190 = vmatpush2.msra.mxu0 0.0
    %191 = vmatprep.subr.mxu0 0.0
    %192 = vmatpush2.msra.mxu0 0.0
    %193 = vmatprep.subr.mxu0 0.0
    %194 = vmatpush2.msra.mxu0 0.0
    %195 = vmatprep.subr.mxu0 0.0
    %196 = vmatpush2.msra.mxu0 0.0
    %197 = vmatprep.subr.mxu0 0.0
    %198 = vmatpush2.msra.mxu0 0.0
    %199 = vmatprep.subr.mxu0 0.0
    %200 = vmatpush2.msra.mxu0 0.0
    %201 = vmatprep.subr.mxu0 0.0
    %202 = vmatpush2.msra.mxu0 0.0
    %203 = vmatprep.subr.mxu0 0.0
    %204 = vmatpush2.msra.mxu0 0.0
    %205 = vmatprep.subr.mxu0 0.0
    %206 = vmatpush2.msra.mxu0 0.0
    %207 = vmatprep.subr.mxu0 0.0
    %208 = vmatpush2.msra.mxu0 0.0
    %209 = vmatprep.subr.mxu0 0.0
    %210 = vmatpush2.msra.mxu0 0.0
    %211 = vmatprep.mubr.f32.mxu0 0.0
    %212 = vmatmul.mubr.f32.gmra.mxu0 %v74
    %v213 = vpop.f32.mrf.mxu0
    %v214 = vadd.f32 0.0, %v213
    %v215 = vpop.f32.mrf.mxu0
    %v216 = vadd.f32 0.0, %v215
    %217 = vdwg.mxu0
    %218 = vmatprep.subr.mxu0 0.0
    %219 = vmatpush1.msra.mxu0 0.0
    %220 = vmatprep.subr.mxu0 0.0
    %221 = vmatpush1.msra.mxu0 0.0
    %222 = vmatprep.subr.mxu0 0.0
    %223 = vmatpush1.msra.mxu0 0.0
    %224 = vmatprep.subr.mxu0 0.0
    %225 = vmatpush1.msra.mxu0 0.0
    %226 = vmatprep.subr.mxu0 0.0
    %227 = vmatpush1.msra.mxu0 0.0
    %228 = vmatprep.subr.mxu0 0.0
    %229 = vmatpush1.msra.mxu0 0.0
    %230 = vmatprep.subr.mxu0 0.0
    %231 = vmatpush1.msra.mxu0 0.0
    %232 = vmatprep.subr.mxu0 0.0
    %233 = vmatpush1.msra.mxu0 0.0
    %234 = vmatprep.subr.mxu0 0.0
    %235 = vmatpush1.msra.mxu0 0.0
    %236 = vmatprep.subr.mxu0 0.0
    %237 = vmatpush1.msra.mxu0 0.0
    %238 = vmatprep.subr.mxu0 0.0
    %239 = vmatpush1.msra.mxu0 0.0
    %240 = vmatprep.subr.mxu0 0.0
    %241 = vmatpush1.msra.mxu0 0.0
    %242 = vmatprep.subr.mxu0 0.0
    %243 = vmatpush1.msra.mxu0 0.0
    %244 = vmatprep.subr.mxu0 0.0
    %245 = vmatpush1.msra.mxu0 0.0
    %246 = vmatprep.subr.mxu0 0.0
    %247 = vmatpush1.msra.mxu0 0.0
    %248 = vmatprep.subr.mxu0 %v71
    %249 = vmatpush1.msra.mxu0 %v70
    %250 = vmatprep.subr.mxu0 0.0
    %251 = vmatpush2.msra.mxu0 0.0
    %252 = vmatprep.subr.mxu0 0.0
    %253 = vmatpush2.msra.mxu0 0.0
    %254 = vmatprep.subr.mxu0 0.0
    %255 = vmatpush2.msra.mxu0 0.0
    %256 = vmatprep.subr.mxu0 0.0
    %257 = vmatpush2.msra.mxu0 0.0
    %258 = vmatprep.subr.mxu0 0.0
    %259 = vmatpush2.msra.mxu0 0.0
    %260 = vmatprep.subr.mxu0 0.0
    %261 = vmatpush2.msra.mxu0 0.0
    %262 = vmatprep.subr.mxu0 0.0
    %263 = vmatpush2.msra.mxu0 0.0
    %264 = vmatprep.subr.mxu0 0.0
    %265 = vmatpush2.msra.mxu0 0.0
    %266 = vmatprep.subr.mxu0 0.0
    %267 = vmatpush2.msra.mxu0 0.0
    %268 = vmatprep.subr.mxu0 0.0
    %269 = vmatpush2.msra.mxu0 0.0
    %270 = vmatprep.subr.mxu0 0.0
    %271 = vmatpush2.msra.mxu0 0.0
    %272 = vmatprep.subr.mxu0 0.0
    %273 = vmatpush2.msra.mxu0 0.0
    %274 = vmatprep.subr.mxu0 0.0
    %275 = vmatpush2.msra.mxu0 0.0
    %276 = vmatprep.subr.mxu0 0.0
    %277 = vmatpush2.msra.mxu0 0.0
    %278 = vmatprep.subr.mxu0 0.0
    %279 = vmatpush2.msra.mxu0 0.0
    %280 = vmatprep.subr.mxu0 0.0
    %281 = vmatpush2.msra.mxu0 0.0
    %282 = vmatprep.mubr.f32.mxu0 0.0
    %283 = vmatmul.mubr.f32.gmra.mxu0 %v74
    %v284 = vpop.f32.mrf.mxu0
    %v285 = vadd.f32 0.0, %v284
    %v286 = vpop.f32.mrf.mxu0
    %v287 = vadd.f32 0.0, %v286
    %288 = vdwg.mxu0
    %v289 = vld [vmem:[#allocation7] sm:$0x3f]
    %v291 = vlaneseq
    %v292 = vshrl.u32 %v291, 7
    %v293 = vsub.s32 0, %v292
    %v294 = vrot.slane %v289, %v293
    %v295 = vlaneseq
    %v296 = vshrl.u32 %v295, 7
    %v297 = vsub.s32 1, %v296
    %v298 = vrot.slane %v289, %v297
    %v299 = vlaneseq
    %v300 = vshrl.u32 %v299, 7
    %v301 = vsub.s32 2, %v300
    %v302 = vrot.slane %v289, %v301
    %v303 = vlaneseq
    %v304 = vshrl.u32 %v303, 7
    %v305 = vsub.s32 3, %v304
    %v306 = vrot.slane %v289, %v305
    %v307 = vlaneseq
    %v308 = vshrl.u32 %v307, 7
    %v309 = vsub.s32 4, %v308
    %v310 = vrot.slane %v289, %v309
    %v311 = vlaneseq
    %v312 = vshrl.u32 %v311, 7
    %v313 = vsub.s32 5, %v312
    %v314 = vrot.slane %v289, %v313
    %v321 = vmul.f32 %v143, %v294
    %v322 = vmul.f32 %v145, %v298
    %v323 = vmul.f32 %v214, %v302
    %v324 = vmul.f32 %v216, %v306
    %v325 = vmul.f32 %v285, %v310
    %v326 = vmul.f32 %v287, %v314
    %v327 = vld [vmem:[#allocation8] sm:$0x3f]
    %v329 = vlaneseq
    %v330 = vshrl.u32 %v329, 7
    %v331 = vsub.s32 0, %v330
    %v332 = vrot.slane %v327, %v331
    %v333 = vlaneseq
    %v334 = vshrl.u32 %v333, 7
    %v335 = vsub.s32 1, %v334
    %v336 = vrot.slane %v327, %v335
    %v337 = vlaneseq
    %v338 = vshrl.u32 %v337, 7
    %v339 = vsub.s32 2, %v338
    %v340 = vrot.slane %v327, %v339
    %v341 = vlaneseq
    %v342 = vshrl.u32 %v341, 7
    %v343 = vsub.s32 3, %v342
    %v344 = vrot.slane %v327, %v343
    %v345 = vlaneseq
    %v346 = vshrl.u32 %v345, 7
    %v347 = vsub.s32 4, %v346
    %v348 = vrot.slane %v327, %v347
    %v349 = vlaneseq
    %v350 = vshrl.u32 %v349, 7
    %v351 = vsub.s32 5, %v350
    %v352 = vrot.slane %v327, %v351
    %v359 = vadd.f32 %v321, %v332
    %v360 = vadd.f32 %v322, %v336
    %v361 = vadd.f32 %v323, %v340
    %v362 = vadd.f32 %v324, %v344
    %v363 = vadd.f32 %v325, %v348
    %v364 = vadd.f32 %v326, %v352
    %v371 = vcombine.low %v359, %v360
    %v372 = vcombine.low %v361, %v362
    %v374 = vunpack.c.l.s4 1983009808
    %v375 = vunpack.c.0.s8 %v374
    %v376 = vlaneseq
    %v377 = vshrl.u32 %v376, 7
    %v378 = vsub.s32 %v375, %v377
    %v379 = vrot.slane %v371, %v378
    %v381 = vunpack.c.l.s4 1983009808
    %v382 = vunpack.c.0.s8 %v381
    %v383 = vlaneseq
    %v384 = vshrl.u32 %v383, 7
    %v385 = vsub.s32 %v382, %v384
    %v386 = vrot.slane %v372, %v385
    %v387 = vcombine.low %v379, %v386
    %v388 = vcombine.low %v363, %v364
    %v390 = vunpack.c.l.s4 1983009808
    %v391 = vunpack.c.0.s8 %v390
    %v392 = vlaneseq
    %v393 = vshrl.u32 %v392, 7
    %v394 = vsub.s32 %v391, %v393
    %v395 = vrot.slane %v388, %v394
    %398 = vst [vmem:[#allocation10] sm:$0xff] %v387
    %399 = vst [vmem:[#allocation10 + $0x8] sm:$0xf] %v395
    // Predicated region
    $region34: #{tpu_custom_call.1} parent=1 // pred_check
      _
    $region35: #{tpu_custom_call.1} parent=1 // pred_check_branch
      %401 = sbr.rel (0) target = $region37
    $region36: #{tpu_custom_call.1} parent=1 // pred_region
      %s403 = ssub.s32 192, 192
      %404 = vsyncadd [#allocation4], %s403
      %s406 = sshll.u32 [#allocation10], 4
      %s407 = int_to_ptr.vmem [resolvable:$true] %s406
      %409 = dma.vmem_to_hbm [thread:$0]  %s407, 192, %s4, [#allocation4]
    $region37: #{tpu_custom_call.1} parent=1 // pred_fallthru
      _
    // Predicated region
    $region38: #{tpu_custom_call.1} parent=1 // pred_check
      _
    $region39: #{tpu_custom_call.1} parent=1 // pred_check_branch
      %411 = sbr.rel (0) target = $region41
    $region40: #{tpu_custom_call.1} parent=1 // pred_region
      %412 = dma.done [#allocation4], 192
    $region41: #{tpu_custom_call.1} parent=1 // pred_fallthru
      _
    %413 = vsyncpa [#allocation3], 1
    %414 = vsyncpa [#allocation6], 1
    %415 = vsyncpa [#allocation9], 1
    %416 = vsyncpa [#allocation4], 1

</llo_original>
